<compile_context>
chip_gen: v5e
topology: v5e:2x2
jax: 0.10.0
libtpu: 0.0.40
codegen_flags: <defaults>
</compile_context>

<pallas_src>
import math
import jax
import jax.numpy as jnp
from jax.experimental import pallas as pl
from jax.experimental.pallas import tpu as pltpu


# ------------------------------ helpers ------------------------------
def _round_up(x, m):
    return ((x + m - 1) // m) * m


def _pick_tile(n, target):
    # tile must be a multiple of 16 (bf16 sublane packing) unless it equals the full dim
    target = _round_up(max(int(target), 16), 16)
    n16 = _round_up(n, 8)
    return min(target, n16)


_VMEM_FULL = pl.BlockSpec(memory_space=pltpu.MemorySpace.VMEM)
_SMEM_FULL = pl.BlockSpec(memory_space=pltpu.MemorySpace.SMEM)
_VMEM_LIMIT = 48 * 1024 * 1024  # < v7x 64 MiB physical VMEM; ample headroom on v5e/v6e


# ---------------- per-type Linear projection: o = x @ W + b (row-tiled) ----------------
def _linear_kernel(x_ref, w_ref, b_ref, o_ref):
    o_ref[...] = (
        jnp.dot(x_ref[...], w_ref[...], preferred_element_type=jnp.float32)
        + b_ref[...]
    )


def linear(x, w, b, *, tile_target=256):
    n, d = x.shape
    h = w.shape[1]
    tile = _pick_tile(n, tile_target)
    n_pad = _round_up(_round_up(n, 8), tile)
    xp = jnp.pad(x, ((0, n_pad - n), (0, 0)))
    out = pl.pallas_call(
        _linear_kernel,
        out_shape=jax.ShapeDtypeStruct((n_pad, h), jnp.float32),
        grid=(n_pad // tile,),
        in_specs=[
            pl.BlockSpec((tile, d), lambda i: (i, 0)),
            pl.BlockSpec((d, h), lambda i: (0, 0)),
            pl.BlockSpec((1, h), lambda i: (0, 0)),
        ],
        out_specs=pl.BlockSpec((tile, h), lambda i: (i, 0)),
        compiler_params=pltpu.CompilerParams(
            dimension_semantics=("parallel",),
            vmem_limit_bytes=_VMEM_LIMIT,
        ),
    )(xp, w, b.reshape(1, h))
    return out[:n]


# ------- adjacency combine + row-wise L2 normalize (F.normalize dim=1 p=2), row-tiled -------
def _adj_kernel(beta_ref, la_ref, m0_ref, m1_ref, g_ref):
    g = la_ref[...] + beta_ref[0] * m0_ref[...] + beta_ref[1] * m1_ref[...]
    row_norm = jnp.sqrt(jnp.sum(g * g, axis=1, keepdims=True))
    g_ref[...] = (g / jnp.maximum(row_norm, 1e-12)).astype(g_ref.dtype)  # torch eps


def build_adj(labeladj, m0, m1, beta, *, tile_m, out_dtype=jnp.float32):
    n_pad = labeladj.shape[0]
    row_in = pl.BlockSpec((tile_m, n_pad), lambda i: (i, 0))
    return pl.pallas_call(
        _adj_kernel,
        out_shape=jax.ShapeDtypeStruct((n_pad, n_pad), out_dtype),
        grid=(n_pad // tile_m,),
        in_specs=[_SMEM_FULL, row_in, row_in, row_in],
        out_specs=pl.BlockSpec((tile_m, n_pad), lambda i: (i, 0)),
        compiler_params=pltpu.CompilerParams(
            dimension_semantics=("parallel",),
            vmem_limit_bytes=_VMEM_LIMIT,
        ),
    )(beta, labeladj, m0, m1)


# -------------------- GraphConvolution: ELU(adj @ (h @ W) + b) --------------------
# support = h @ W is tiny ((N, H) ~ 0.5 MB) -> one small un-tiled kernel per layer.
def _support_kernel(h_ref, w_ref, o_ref):
    o_ref[...] = jnp.dot(h_ref[...], w_ref[...], preferred_element_type=jnp.float32)


def gcn_support(h, w):
    n_pad = h.shape[0]
    hid = w.shape[1]
    return pl.pallas_call(
        _support_kernel,
        out_shape=jax.ShapeDtypeStruct((n_pad, hid), jnp.float32),
        in_specs=[_VMEM_FULL, _VMEM_FULL],
        out_specs=_VMEM_FULL,
    )(h, w)


# The big matmul streams g row-tiles (the dominant HBM traffic), support stays resident.
def _gcn_apply_kernel(g_ref, s_ref, b_ref, o_ref):
    s = s_ref[...].astype(g_ref.dtype)  # bf16 path: both operands bf16, fp32 accumulate
    out = jnp.dot(g_ref[...], s, preferred_element_type=jnp.float32) + b_ref[...]
    # ELU(alpha=1): x if x > 0 else exp(x) - 1
    o_ref[...] = jnp.where(out > 0.0, out, jnp.exp(jnp.minimum(out, 0.0)) - 1.0)


def gcn_apply(g, support, b, *, tile_m):
    n_pad = g.shape[0]
    hid = support.shape[1]
    return pl.pallas_call(
        _gcn_apply_kernel,
        out_shape=jax.ShapeDtypeStruct((n_pad, hid), jnp.float32),
        grid=(n_pad // tile_m,),
        in_specs=[
            pl.BlockSpec((tile_m, n_pad), lambda i: (i, 0)),   # streamed g tile
            pl.BlockSpec((n_pad, hid), lambda i: (0, 0)),      # resident support
            pl.BlockSpec((1, hid), lambda i: (0, 0)),          # resident bias
        ],
        out_specs=pl.BlockSpec((tile_m, hid), lambda i: (i, 0)),
        compiler_params=pltpu.CompilerParams(
            dimension_semantics=("parallel",),
            vmem_limit_bytes=_VMEM_LIMIT,
        ),
    )(g, support, b.reshape(1, hid))


def gcn_layer(h, w, b, g, *, tile_m):
    support = gcn_support(h, w)
    return gcn_apply(g, support, b, tile_m=tile_m)


# -------------- parameter init (deterministic, mirrors module __init__) --------------
def init_params(key, in_dims, num_hidden, num_layers):
    params = {"ntfc": [], "gcn": []}
    for d in in_dims:
        key, k1, k2 = jax.random.split(key, 3)
        # xavier_normal_(gain=1.414) on a (num_hidden, d) torch weight; stored transposed (d, H)
        std = 1.414 * math.sqrt(2.0 / (d + num_hidden))
        w = std * jax.random.normal(k1, (d, num_hidden), jnp.float32)
        bound = 1.0 / math.sqrt(d)  # default nn.Linear bias init
        b = jax.random.uniform(k2, (num_hidden,), jnp.float32, -bound, bound)
        params["ntfc"].append((w, b))
    stdv = 1.0 / math.sqrt(num_hidden)  # GraphConvolution.reset_parameters
    for _ in range(num_layers):
        key, k1, k2 = jax.random.split(key, 3)
        w = jax.random.uniform(k1, (num_hidden, num_hidden), jnp.float32, -stdv, stdv)
        b = jax.random.uniform(k2, (num_hidden,), jnp.float32, -stdv, stdv)
        params["gcn"].append((w, b))
    return params


# ------------------------------ `ho.forward` ------------------------------
def ho_forward(params, labeladj, f, mate, beta, num_layers, *,
               tile_m_target=256, g_dtype=jnp.float32):
    # 1. per-type projections, concatenated
    h_parts = [linear(x, w, b) for (w, b), x in zip(params["ntfc"], f)]
    h = jnp.concatenate(h_parts, axis=0)
    n = h.shape[0]

    # pad node count to a tile-aligned size (zero rows/cols are inert and sliced off at the end)
    tile_m = _pick_tile(n, tile_m_target)
    n_pad = _round_up(_round_up(n, 8), tile_m)
    pad = n_pad - n
    h = jnp.pad(h, ((0, pad), (0, 0)))
    la = jnp.pad(labeladj, ((0, pad), (0, pad)))
    m0 = jnp.pad(mate[0], ((0, pad), (0, pad)))
    m1 = jnp.pad(mate[1], ((0, pad), (0, pad)))

    # 2. combined + row-normalized adjacency (optionally stored bf16 to halve HBM traffic)
    g = build_adj(la, m0, m1, beta, tile_m=tile_m, out_dtype=g_dtype)

    # 3. GCN layers
    for l in range(num_layers):
        w, b = params["gcn"][l]
        h = gcn_layer(h, w, b, g, tile_m=tile_m)          # .flatten(1) is a no-op on 2-D
    # 4. the module applies its last GCN layer a second time (gcnlayers[-1])
    w, b = params["gcn"][-1]
    h = gcn_layer(h, w, b, g, tile_m=tile_m)

    # 5. clamping slice (also drops padded rows)
    return h[:min(4278, n), :]


# ---------------- pure-JAX reference for verification ----------------
def ho_forward_ref(params, labeladj, f, mate, beta, num_layers):
    h = jnp.concatenate([x @ w + b for (w, b), x in zip(params["ntfc"], f)], axis=0)
    g = labeladj + beta[0] * mate[0] + beta[1] * mate[1]
    g = g / jnp.maximum(jnp.linalg.norm(g, axis=1, keepdims=True), 1e-12)

    def elu(x):
        return jnp.where(x > 0.0, x, jnp.exp(jnp.minimum(x, 0.0)) - 1.0)

    for l in range(num_layers):
        w, b = params["gcn"][l]
        h = elu(g @ (h @ w) + b)
    w, b = params["gcn"][-1]
    h = elu(g @ (h @ w) + b)
    return h[:4278, :]


if __name__ == "__main__":
    in_dims = [40, 56]          # two node types
    nodes_per_type = [20, 27]   # N = 47 -> padded to 48, tile 16 -> 3 row tiles (exercises grid)
    num_hidden = 32
    num_layers = 2
    N = sum(nodes_per_type)

    key = jax.random.PRNGKey(0)
    key, kp = jax.random.split(key)
    params = init_params(kp, in_dims, num_hidden, num_layers)

    # inputs
    f = []
    for n_i, d in zip(nodes_per_type, in_dims):
        key, kf = jax.random.split(key)
        f.append(jax.random.normal(kf, (n_i, d), jnp.float32))
    key, k1, k2, k3 = jax.random.split(key, 4)
    labeladj = jax.random.uniform(k1, (N, N), jnp.float32)
    mate = [jax.random.uniform(k2, (N, N), jnp.float32),
            jax.random.uniform(k3, (N, N), jnp.float32)]
    beta = jnp.array([0.3, 0.7], jnp.float32)

    ref = ho_forward_ref(params, labeladj, f, mate, beta, num_layers)

    # fp32 path (small tile target so the toy size actually runs multiple grid tiles)
    out = ho_forward(params, labeladj, f, mate, beta, num_layers, tile_m_target=16)
    out = jax.block_until_ready(out)
    assert out.shape == (N, num_hidden), out.shape
    assert jnp.allclose(out, ref, atol=1e-4, rtol=1e-4), \
        f"fp32 max abs err {jnp.max(jnp.abs(out - ref))}"

    # bf16-g path (halves HBM traffic of the dominant g stream); bf16 quantization of g
    # changes numerics at ~1e-2 relative, so compare with a loose tolerance.
    out_bf16 = ho_forward(params, labeladj, f, mate, beta, num_layers,
                          tile_m_target=16, g_dtype=jnp.bfloat16)
    out_bf16 = jax.block_until_ready(out_bf16)
    assert out_bf16.shape == (N, num_hidden), out_bf16.shape
    assert jnp.allclose(out_bf16, ref, atol=5e-1, rtol=1e-1), \
        f"bf16 max abs err {jnp.max(jnp.abs(out_bf16 - ref))}"

    print("KERNEL_OK")
</pallas_src>

<mosaic_0001>
module attributes {stable_mosaic.version = 11 : i64} {
  func.func @_linear_kernel(%arg0: i32, %arg1: memref<24x40xf32, #tpu.memory_space<vmem>>, %arg2: memref<40x32xf32, #tpu.memory_space<vmem>>, %arg3: memref<1x32xf32, #tpu.memory_space<vmem>>, %arg4: memref<24x32xf32, #tpu.memory_space<vmem>>) attributes {dimension_semantics = [#tpu.dimension_semantics<parallel>], iteration_bounds = array<i64: 1>, scalar_prefetch = 0 : i64, scratch_operands = 0 : i64, tpu.core_type = #tpu.core_type<tc>, window_params = [{transform_indices = @transform_0, window_bounds = array<i64: 24, 40>}, {pipeline_mode = #tpu.pipeline_mode<synchronous>, transform_indices = @transform_1, window_bounds = array<i64: 40, 32>}, {pipeline_mode = #tpu.pipeline_mode<synchronous>, transform_indices = @transform_2, window_bounds = array<i64: 1, 32>}, {transform_indices = @transform_3, window_bounds = array<i64: 24, 32>}]} {
    %c0 = arith.constant 0 : index
    %c0_0 = arith.constant 0 : index
    %0 = vector.load %arg1[%c0, %c0_0] : memref<24x40xf32, #tpu.memory_space<vmem>>, vector<24x40xf32>
    %c0_1 = arith.constant 0 : index
    %c0_2 = arith.constant 0 : index
    %1 = vector.load %arg2[%c0_1, %c0_2] : memref<40x32xf32, #tpu.memory_space<vmem>>, vector<40x32xf32>
    %cst = arith.constant dense<0.000000e+00> : vector<24x32xf32>
    %2 = tpu.matmul %0, %1, %cst {dimension_numbers = #tpu.dot_dimension_numbers<[1], [0], [0], [1], [0, 0, 1, 1], [], []>} : vector<24x40xf32>, vector<40x32xf32>, vector<24x32xf32> -> vector<24x32xf32>
    %c0_3 = arith.constant 0 : index
    %c0_4 = arith.constant 0 : index
    %3 = vector.load %arg3[%c0_3, %c0_4] : memref<1x32xf32, #tpu.memory_space<vmem>>, vector<1x32xf32>
    %4 = vector.broadcast %3 : vector<1x32xf32> to vector<24x32xf32>
    %5 = arith.addf %2, %4 : vector<24x32xf32>
    %c0_5 = arith.constant 0 : index
    %c0_6 = arith.constant 0 : index
    %6 = vector.load %arg4[%c0_5, %c0_6] : memref<24x32xf32, #tpu.memory_space<vmem>>, vector<24x32xf32>
    tpu.vector_store %arg4[%c0_5, %c0_6], %5 {strides = array<i32>} : memref<24x32xf32, #tpu.memory_space<vmem>>, vector<24x32xf32>,
    return
  }
  func.func @transform_0(%arg0: i32) -> (i32, i32) {
    %c0_i32 = arith.constant 0 : i32
    %c0_i32_0 = arith.constant 0 : i32
    return %arg0, %c0_i32 : i32, i32
  }
  func.func @transform_1(%arg0: i32) -> (i32, i32) {
    %c0_i32 = arith.constant 0 : i32
    %c0_i32_0 = arith.constant 0 : i32
    %c0_i32_1 = arith.constant 0 : i32
    return %c0_i32, %c0_i32_0 : i32, i32
  }
  func.func @transform_2(%arg0: i32) -> (i32, i32) {
    %c0_i32 = arith.constant 0 : i32
    %c0_i32_0 = arith.constant 0 : i32
    %c0_i32_1 = arith.constant 0 : i32
    return %c0_i32, %c0_i32_0 : i32, i32
  }
  func.func @transform_3(%arg0: i32) -> (i32, i32) {
    %c0_i32 = arith.constant 0 : i32
    %c0_i32_0 = arith.constant 0 : i32
    return %arg0, %c0_i32 : i32, i32
  }
}

</mosaic_0001>

<llo_original>
// kernel: tpu_custom_call.1
$region0: #{tpu_custom_call.1}
  #allocation0 [shape = 'u32[]', space=smem, size = 0x4, offset = 0x4, fixed_abs, tag = 'smem constant byte address 0x4 - core index']
  #allocation1 [shape = 'u32[72,128]{1,0:T(1,128)}', space=vmem, size = 0x9000, scoped, tag = 'internal scratch']
  %s0 = inlined_call_operand.vmem [shape: f32[24,40], index: 0, kind: input, shape index: {}]
  %s1 = inlined_call_operand.vmem [shape: f32[40,32], index: 1, kind: input, shape index: {}]
  %s2 = inlined_call_operand.vmem [shape: f32[1,32], index: 2, kind: input, shape index: {}]
  %s3 = inlined_call_operand.hbm [shape: f32[24,32], index: 3, kind: output, shape index: {}]
  %s4 = sld [smem:[#allocation0]]
  $region22: #{tpu_custom_call.1} parent=0
    _
  %s6 = ssub.s32 1, %s4
  %s7 = scalar_select 0, %s6, %s4
  $region1: #{tpu_custom_call.1} parent=0
    #allocation2 [shape = 'u8[12288]{0}', space=vmem, size = 0x3000, scoped, tag = 'output window, operand 0, single buffered']
    #allocation3 [shape = 's32[1]{0}', space=sflag, size = 0x4, scoped, tag = 'scoped memory for tpu_custom_call.1']
    %8 = vsyncpa [#allocation3], 0
    // Predicated region
    $region2: #{tpu_custom_call.1} parent=1 // pred_check
      _
    $region3: #{tpu_custom_call.1} parent=1 // pred_check_branch
      %10 = sbr.rel (0) target = $region5
    $region4: #{tpu_custom_call.1} parent=1 // pred_region
      _
    $region5: #{tpu_custom_call.1} parent=1 // pred_fallthru
      _
    // Predicated region
    $region6: #{tpu_custom_call.1} parent=1 // pred_check
      _
    $region7: #{tpu_custom_call.1} parent=1 // pred_check_branch
      %12 = sbr.rel (0) target = $region9
    $region8: #{tpu_custom_call.1} parent=1 // pred_region
      _
    $region9: #{tpu_custom_call.1} parent=1 // pred_fallthru
      _
    // Predicated region
    $region10: #{tpu_custom_call.1} parent=1 // pred_check
      _
    $region11: #{tpu_custom_call.1} parent=1 // pred_check_branch
      %14 = sbr.rel (0) target = $region13
    $region12: #{tpu_custom_call.1} parent=1 // pred_region
      _
    $region13: #{tpu_custom_call.1} parent=1 // pred_fallthru
      _
    %v15 = vld [vmem:[%s0] sm:$0xff]
    %v16 = vld [vmem:[%s0 + $0x8] sm:$0xff]
    %v17 = vld [vmem:[%s0 + $0x10] sm:$0xff]
    %v18 = vld [vmem:[%s1] sm:$0xff]
    %v19 = vld [vmem:[%s1 + $0x8] sm:$0xff]
    %v20 = vld [vmem:[%s1 + $0x10] sm:$0xff]
    %v21 = vld [vmem:[%s1 + $0x18] sm:$0xff]
    %v22 = vld [vmem:[%s1 + $0x20] sm:$0xff]
    %v23 = vld [vmem:[%s2] sm:$0x1]
    %v25 = vperm.slane %v23, 0
    %vm27 = vcmask 326656
    %v29 = vsel %vm27, %v15, 0
    %v32 = vsel %vm27, %v16, 0
    %v35 = vsel %vm27, %v17, 0
    %37 = vmatpush.msra.mxu0 0.0
    %38 = vmatpush.msra.mxu0 0.0
    %39 = vmatpush.msra.mxu0 0.0
    %40 = vmatpush.msra.mxu0 0.0
    %41 = vmatpush.msra.mxu0 0.0
    %42 = vmatpush.msra.mxu0 0.0
    %43 = vmatpush.msra.mxu0 0.0
    %44 = vmatpush.msra.mxu0 0.0
    %45 = vmatpush.msra.mxu0 0.0
    %46 = vmatpush.msra.mxu0 0.0
    %47 = vmatpush.msra.mxu0 0.0
    %48 = vmatpush.msra.mxu0 %v22
    %49 = vmatpush.msra.mxu0 %v21
    %50 = vmatpush.msra.mxu0 %v20
    %51 = vmatpush.msra.mxu0 %v19
    %52 = vmatpush.msra.mxu0 %v18
    %53 = vmatmul.f32.gmra.mxu0 %v29
    %v54 = vpop.f32.mrf.mxu0
    %v55 = vadd.f32 %v25, %v54
    %56 = vmatmul.f32.gmra.mxu0 %v32
    %v57 = vpop.f32.mrf.mxu0
    %v58 = vadd.f32 %v25, %v57
    %59 = vmatmul.f32.gmra.mxu0 %v35
    %v60 = vpop.f32.mrf.mxu0
    %v61 = vadd.f32 %v25, %v60
    %62 = vdwg.mxu0
    %vm63 = vcmask 261120
    %64 = vst.msk [vmem:[#allocation2] sm:$0xff] %vm63, %v55
    %65 = vst.msk [vmem:[#allocation2 + $0x8] sm:$0xff] %vm63, %v58
    %66 = vst.msk [vmem:[#allocation2 + $0x10] sm:$0xff] %vm63, %v61
    // Predicated region
    $region14: #{tpu_custom_call.1} parent=1 // pred_check
      _
    $region15: #{tpu_custom_call.1} parent=1 // pred_check_branch
      %68 = sbr.rel (0) target = $region17
    $region16: #{tpu_custom_call.1} parent=1 // pred_region
      %70 = vsyncadd [#allocation3], 0
      %s71 = sshll.u32 [#allocation2], 4
      %s72 = int_to_ptr.vmem [resolvable:$true] %s71
      %s73 = sshll.u32 %s3, 4
      %s74 = int_to_ptr.hbm [resolvable:$true] %s73
      %79 = dma.vmem_to_hbm [thread:$0]  %s72, 384, %s74, [#allocation3], 128, 128, 8
    $region17: #{tpu_custom_call.1} parent=1 // pred_fallthru
      _
    // Predicated region
    $region18: #{tpu_custom_call.1} parent=1 // pred_check
      _
    $region19: #{tpu_custom_call.1} parent=1 // pred_check_branch
      %81 = sbr.rel (0) target = $region21
    $region20: #{tpu_custom_call.1} parent=1 // pred_region
      %83 = dma.done [#allocation3], 384
    $region21: #{tpu_custom_call.1} parent=1 // pred_fallthru
      _
    %84 = vsyncpa [#allocation3], 1

</llo_original>
